<compile_context>
chip_gen: v7x
topology: tpu7x:2x2x1
jax: 0.10.0
libtpu: 0.0.40
codegen_flags: <defaults>
</compile_context>

<pallas_src>
import numpy as np
import jax
import jax.numpy as jnp
from jax.experimental import pallas as pl
from jax.experimental.pallas import tpu as pltpu


def _round_up(x, m):
    return (x + m - 1) // m * m


def regrid_kernel(counts_ref, ids_ref, x_ref, mt_ref, o_ref):
    """One (tm, tn) output tile; K loop walks only the nonzero K-blocks."""
    j = pl.program_id(1)
    k = pl.program_id(2)

    @pl.when(k == 0)
    def _():
        o_ref[...] = jnp.zeros_like(o_ref)

    # Skip padded K steps (this N-tile has fewer nonzero K-blocks than max_nnz).
    @pl.when(k < counts_ref[j])
    def _():
        o_ref[...] += jnp.dot(
            x_ref[...], mt_ref[...], preferred_element_type=jnp.float32
        )


def prepare_regrid_operator(M, *, tk=512, tn=512):
    """One-time prep for a fixed regrid matrix M (N_out, N_in):
    transpose, pad to tiles, bf16-cast, and build the block-sparsity schedule."""
    M = jnp.asarray(M, jnp.float32)
    n_out, n_in = M.shape

    tk = min(tk, _round_up(n_in, 128))
    tn = min(tn, _round_up(n_out, 128))
    n_in_p = _round_up(n_in, tk)
    n_out_p = _round_up(n_out, tn)

    mt = M.T                                                     # hoisted transpose
    mt_p = jnp.pad(mt, ((0, n_in_p - n_in), (0, n_out_p - n_out)))

    # Host-side per-N-tile nonzero K-block schedule (static shapes).
    kb, nb = n_in_p // tk, n_out_p // tn
    nz = np.asarray(mt_p != 0).reshape(kb, tk, nb, tn).any(axis=(1, 3))  # (kb, nb)
    counts = nz.sum(axis=0).astype(np.int32)                              # (nb,)
    max_nnz = max(int(counts.max()), 1)
    ids = np.zeros((nb, max_nnz), dtype=np.int32)
    for j in range(nb):
        idx = np.nonzero(nz[:, j])[0]
        if idx.size:
            ids[j, : idx.size] = idx
            ids[j, idx.size:] = idx[-1]   # pad with last valid block -> no extra DMA

    return dict(
        mt=mt_p.astype(jnp.bfloat16),
        counts=jnp.asarray(counts),
        ids=jnp.asarray(ids),
        n_in=n_in, n_out=n_out, n_in_p=n_in_p, n_out_p=n_out_p,
        tk=tk, tn=tn, max_nnz=max_nnz,
    )


def tempest_regrid(x, op, lat_out, lon_out):
    """x: (B, C, H, W) -> (B, C, lat_out, lon_out) via the prepared operator."""
    b, c, h, w = x.shape
    n_in, n_out = op["n_in"], op["n_out"]
    assert h * w == n_in
    assert lat_out * lon_out == n_out
    tk, tn = op["tk"], op["tn"]

    bc = b * c
    tm = min(256, _round_up(bc, 8))
    bc_p = _round_up(bc, tm)

    xr = x.reshape(bc, n_in).astype(jnp.bfloat16)
    xr_p = jnp.pad(xr, ((0, bc_p - bc), (0, op["n_in_p"] - n_in)))

    grid = (bc_p // tm, op["n_out_p"] // tn, op["max_nnz"])

    yr_p = pl.pallas_call(
        regrid_kernel,
        out_shape=jax.ShapeDtypeStruct((bc_p, op["n_out_p"]), jnp.float32),
        grid_spec=pltpu.PrefetchScalarGridSpec(
            num_scalar_prefetch=2,          # counts, ids
            grid=grid,
            in_specs=[
                # x K-tile: pick the k-th nonzero K-block of N-tile j.
                pl.BlockSpec((tm, tk), lambda i, j, k, cnt, ids: (i, ids[j, k])),
                # M.T block: (nonzero K-block, N-tile j).
                pl.BlockSpec((tk, tn), lambda i, j, k, cnt, ids: (ids[j, k], j)),
            ],
            # Constant in k -> output tile stays resident (accumulator).
            out_specs=pl.BlockSpec((tm, tn), lambda i, j, k, cnt, ids: (i, j)),
        ),
        compiler_params=pltpu.CompilerParams(
            dimension_semantics=("parallel", "parallel", "arbitrary"),
        ),
    )(op["counts"], op["ids"], xr_p, op["mt"])

    return yr_p[:bc, :n_out].reshape(b, c, lat_out, lon_out)


def make_synthetic_regrid_matrix(key, n_out, n_in, density=0.1):
    """Deterministic synthetic 'sparse' regrid matrix (dense storage):
    mostly-zero nonnegative rows that sum to 1 (like a Tempest remap operator)."""
    k_val, k_mask = jax.random.split(key)
    vals = jax.random.uniform(k_val, (n_out, n_in), dtype=jnp.float32)
    mask = jax.random.uniform(k_mask, (n_out, n_in)) < density
    M = jnp.where(mask, vals, 0.0)
    row_sum = jnp.maximum(M.sum(axis=1, keepdims=True), 1e-6)
    return M / row_sum


if __name__ == "__main__":
    key = jax.random.PRNGKey(0)
    k_x, k_m = jax.random.split(key)

    # Small shapes: input grid 16x16 (N_in = 256), output grid 8x16 (N_out = 128).
    B, C, H, W = 2, 4, 16, 16
    LAT_OUT, LON_OUT = 8, 16
    N_IN = H * W
    N_OUT = LAT_OUT * LON_OUT

    x = jax.random.normal(k_x, (B, C, H, W), dtype=jnp.float32)
    M = make_synthetic_regrid_matrix(k_m, N_OUT, N_IN)

    # One-time operator prep (transpose / pad / bf16 / sparsity schedule hoisted).
    op = prepare_regrid_operator(M)

    y = tempest_regrid(x, op, LAT_OUT, LON_OUT)
    y = jax.block_until_ready(y)
    assert y.shape == (B, C, LAT_OUT, LON_OUT)

    # Reference 1: same numerics as the kernel (bf16 operands, f32 accumulation).
    xr16 = x.reshape(B, C, N_IN).astype(jnp.bfloat16)
    mt16 = M.T.astype(jnp.bfloat16)
    y_ref16 = jnp.einsum(
        "bcn,no->bco", xr16, mt16, preferred_element_type=jnp.float32
    ).reshape(B, C, LAT_OUT, LON_OUT)
    assert jnp.allclose(y, y_ref16, atol=1e-3, rtol=1e-3)

    # Reference 2: full-f32 PyTorch-equivalent forward (looser tol due to bf16 weights).
    xr = x.reshape(B, C, N_IN)
    y_ref32 = jnp.einsum("bcn,on->bco", xr, M).reshape(B, C, LAT_OUT, LON_OUT)
    assert jnp.allclose(y, y_ref32, atol=3e-2, rtol=3e-2)

    print("KERNEL_OK")
</pallas_src>

<mosaic_0001>
module attributes {stable_mosaic.version = 11 : i64} {
  func.func @regrid_kernel(%arg0: i32, %arg1: i32, %arg2: i32, %arg3: memref<1xi32, #tpu.memory_space<smem>>, %arg4: memref<1x1xi32, #tpu.memory_space<smem>>, %arg5: memref<8x256xbf16, #tpu.memory_space<vmem>>, %arg6: memref<256x128xbf16, #tpu.memory_space<vmem>>, %arg7: memref<8x128xf32, #tpu.memory_space<vmem>>) attributes {dimension_semantics = [#tpu.dimension_semantics<parallel>, #tpu.dimension_semantics<parallel>, #tpu.dimension_semantics<arbitrary>], iteration_bounds = array<i64: 1, 1, 1>, scalar_prefetch = 2 : i64, scratch_operands = 0 : i64, tpu.core_type = #tpu.core_type<tc>, window_params = [{transform_indices = @transform_0, window_bounds = array<i64: 8, 256>}, {transform_indices = @transform_1, window_bounds = array<i64: 256, 128>}, {transform_indices = @transform_2, window_bounds = array<i64: 8, 128>}]} {
    %c0_i32 = arith.constant 0 : i32
    %0 = arith.cmpi eq, %arg2, %c0_i32 : i32
    %1 = arith.extui %0 : i1 to i32
    %c0_i32_0 = arith.constant 0 : i32
    %2 = arith.cmpi ne, %1, %c0_i32_0 : i32
    scf.if %2 {
      %cst = arith.constant 0.000000e+00 : f32
      %8 = vector.broadcast %cst : f32 to vector<8x128xf32>
      %c0 = arith.constant 0 : index
      %c0_2 = arith.constant 0 : index
      %9 = vector.load %arg7[%c0, %c0_2] : memref<8x128xf32, #tpu.memory_space<vmem>>, vector<8x128xf32>
      tpu.vector_store %arg7[%c0, %c0_2], %8 {strides = array<i32>} : memref<8x128xf32, #tpu.memory_space<vmem>>, vector<8x128xf32>,
    } else {
    }
    %3 = arith.index_cast %arg1 : i32 to index
    %4 = memref.load %arg3[%3] : memref<1xi32, #tpu.memory_space<smem>>
    %5 = arith.cmpi slt, %arg2, %4 : i32
    %6 = arith.extui %5 : i1 to i32
    %c0_i32_1 = arith.constant 0 : i32
    %7 = arith.cmpi ne, %6, %c0_i32_1 : i32
    scf.if %7 {
      %c0 = arith.constant 0 : index
      %c0_2 = arith.constant 0 : index
      %8 = vector.load %arg7[%c0, %c0_2] : memref<8x128xf32, #tpu.memory_space<vmem>>, vector<8x128xf32>
      %c0_3 = arith.constant 0 : index
      %c0_4 = arith.constant 0 : index
      %9 = vector.load %arg5[%c0_3, %c0_4] : memref<8x256xbf16, #tpu.memory_space<vmem>>, vector<8x256xbf16>
      %c0_5 = arith.constant 0 : index
      %c0_6 = arith.constant 0 : index
      %10 = vector.load %arg6[%c0_5, %c0_6] : memref<256x128xbf16, #tpu.memory_space<vmem>>, vector<256x128xbf16>
      %cst = arith.constant dense<0.000000e+00> : vector<8x128xf32>
      %11 = tpu.matmul %9, %10, %cst {dimension_numbers = #tpu.dot_dimension_numbers<[1], [0], [0], [1], [0, 0, 1, 1], [], []>} : vector<8x256xbf16>, vector<256x128xbf16>, vector<8x128xf32> -> vector<8x128xf32>
      %12 = arith.addf %8, %11 : vector<8x128xf32>
      %c0_7 = arith.constant 0 : index
      %c0_8 = arith.constant 0 : index
      %13 = vector.load %arg7[%c0_7, %c0_8] : memref<8x128xf32, #tpu.memory_space<vmem>>, vector<8x128xf32>
      tpu.vector_store %arg7[%c0_7, %c0_8], %12 {strides = array<i32>} : memref<8x128xf32, #tpu.memory_space<vmem>>, vector<8x128xf32>,
    } else {
    }
    return
  }
  func.func @transform_0(%arg0: i32, %arg1: i32, %arg2: i32, %arg3: memref<1xi32, #tpu.memory_space<smem>>, %arg4: memref<1x1xi32, #tpu.memory_space<smem>>) -> (i32, i32) {
    %0 = arith.index_cast %arg1 : i32 to index
    %1 = arith.index_cast %arg2 : i32 to index
    %2 = memref.load %arg4[%0, %1] : memref<1x1xi32, #tpu.memory_space<smem>>
    %c0_i32 = arith.constant 0 : i32
    return %arg0, %2 : i32, i32
  }
  func.func @transform_1(%arg0: i32, %arg1: i32, %arg2: i32, %arg3: memref<1xi32, #tpu.memory_space<smem>>, %arg4: memref<1x1xi32, #tpu.memory_space<smem>>) -> (i32, i32) {
    %0 = arith.index_cast %arg1 : i32 to index
    %1 = arith.index_cast %arg2 : i32 to index
    %2 = memref.load %arg4[%0, %1] : memref<1x1xi32, #tpu.memory_space<smem>>
    %c0_i32 = arith.constant 0 : i32
    return %2, %arg1 : i32, i32
  }
  func.func @transform_2(%arg0: i32, %arg1: i32, %arg2: i32, %arg3: memref<1xi32, #tpu.memory_space<smem>>, %arg4: memref<1x1xi32, #tpu.memory_space<smem>>) -> (i32, i32) {
    %c0_i32 = arith.constant 0 : i32
    return %arg0, %arg1 : i32, i32
  }
}

</mosaic_0001>

<llo_original>
// kernel: tpu_custom_call.1
$region0: #{tpu_custom_call.1}
  #allocation0 [shape = 'u32[]', space=smem, size = 0x4, offset = 0x4, fixed_abs, tag = 'smem constant byte address 0x4 - core index']
  #allocation1 [shape = 'u32[144,128]{1,0:T(1,128)}', space=vmem, size = 0x12000, scoped, tag = 'internal scratch']
  #allocation2 [shape = 's32[1]{0}', space=sflag, size = 0x4, scoped, tag = 'scoped memory for tpu_custom_call.1']
  #allocation3 [shape = 's32[1]{0:T(128)S(6)}', space=smem, size = 0x200, scoped, tag = 'prefetched SMEM operand 0']
  #allocation4 [shape = 's32[1,1]{1,0:T(1,128)S(6)}', space=smem, size = 0x200, scoped, tag = 'prefetched SMEM operand 1']
  %s0 = inlined_call_operand.<no memory space> [shape: s32[1], index: 0, kind: input, shape index: {}]
  %s1 = inlined_call_operand.<no memory space> [shape: s32[1,1], index: 1, kind: input, shape index: {}]
  %s2 = inlined_call_operand.hbm [shape: bf16[8,256], index: 2, kind: input, shape index: {}]
  %s3 = inlined_call_operand.hbm [shape: bf16[256,128], index: 3, kind: input, shape index: {}]
  %s4 = inlined_call_operand.hbm [shape: f32[8,128], index: 4, kind: output, shape index: {}]
  %s5 = sld [smem:[#allocation0]]
  $region34: #{tpu_custom_call.1} parent=0
    _
  %s7 = ssub.s32 1, %s5
  %s8 = scalar_select 0, %s7, %s5
  %9 = sst [smem:[#allocation3]] %s0
  %10 = sst [smem:[#allocation4]] %s1
  $region1: #{tpu_custom_call.1} parent=0
    #allocation5 [shape = 'u8[4096]{0}', space=vmem, size = 0x1000, scoped, tag = 'input window, operand 2, single buffered']
    #allocation6 [shape = 's32[1]{0}', space=sflag, size = 0x4, scoped, tag = 'scoped memory for tpu_custom_call.1']
    #allocation7 [shape = 's32[1]{0}', space=sflag, size = 0x4, scoped, tag = 'scoped memory for tpu_custom_call.1']
    #allocation8 [shape = 'u8[65536]{0}', space=vmem, size = 0x10000, scoped, tag = 'input window, operand 3, single buffered']
    #allocation9 [shape = 's32[1]{0}', space=sflag, size = 0x4, scoped, tag = 'scoped memory for tpu_custom_call.1']
    #allocation10 [shape = 'u8[4096]{0}', space=vmem, size = 0x1000, scoped, tag = 'output window, operand 0, single buffered']
    %11 = vsyncpa [#allocation6], 0
    %12 = vsyncpa [#allocation9], 0
    %13 = vsyncpa [#allocation7], 0
    // Predicated region
    $region2: #{tpu_custom_call.1} parent=1 // pred_check
      _
    $region3: #{tpu_custom_call.1} parent=1 // pred_check_branch
      %15 = sbr.rel (0) target = $region5
    $region4: #{tpu_custom_call.1} parent=1 // pred_region
      %s16 = sadd.s32 0, 0
      %s17 = smul.u32 %s16, 128
      %s18 = sadd.s32 %s17, 0
      %s19 = sld [smem:[#allocation4 + %s18]]
      %s20 = smul.u32 2, %s19
      %s22 = ssub.s32 128, 128
      %23 = vsyncadd [#allocation6], %s22
      %s24 = smul.addr %s20, 64
      %s25 = scalar_lea.hbm %s2, %s24
      %s27 = sshll.u32 [#allocation5], 4
      %s28 = int_to_ptr.vmem [resolvable:$true] %s27
      %30 = dma.hbm_to_vmem [thread:$0]  %s25, 128, %s28, [#allocation6]
    $region5: #{tpu_custom_call.1} parent=1 // pred_fallthru
      _
    // Predicated region
    $region6: #{tpu_custom_call.1} parent=1 // pred_check
      _
    $region7: #{tpu_custom_call.1} parent=1 // pred_check_branch
      %32 = sbr.rel (0) target = $region9
    $region8: #{tpu_custom_call.1} parent=1 // pred_region
      %s33 = sadd.s32 0, 0
      %s34 = smul.u32 %s33, 128
      %s35 = sadd.s32 %s34, 0
      %s36 = sld [smem:[#allocation4 + %s35]]
      %s37 = smul.u32 32, %s36
      %s39 = ssub.s32 2048, 2048
      %40 = vsyncadd [#allocation9], %s39
      %s41 = smul.addr %s37, 64
      %s42 = scalar_lea.hbm %s3, %s41
      %s43 = sshll.u32 [#allocation8], 4
      %s44 = int_to_ptr.vmem [resolvable:$true] %s43
      %49 = dma.hbm_to_vmem [thread:$0]  %s42, 2048, %s44, [#allocation9], 64, 64, 4
    $region9: #{tpu_custom_call.1} parent=1 // pred_fallthru
      _
    // Predicated region
    $region10: #{tpu_custom_call.1} parent=1 // pred_check
      _
    $region11: #{tpu_custom_call.1} parent=1 // pred_check_branch
      %51 = sbr.rel (0) target = $region13
    $region12: #{tpu_custom_call.1} parent=1 // pred_region
      %52 = dma.done [#allocation6], 128
    $region13: #{tpu_custom_call.1} parent=1 // pred_fallthru
      _
    // Predicated region
    $region14: #{tpu_custom_call.1} parent=1 // pred_check
      _
    $region15: #{tpu_custom_call.1} parent=1 // pred_check_branch
      %54 = sbr.rel (0) target = $region17
    $region16: #{tpu_custom_call.1} parent=1 // pred_region
      %55 = dma.done [#allocation9], 2048
    $region17: #{tpu_custom_call.1} parent=1 // pred_fallthru
      _
    %s56 = sadd.s32 0, 0
    %s57 = smul.u32 %s56, 128
    %s58 = sadd.s32 %s57, 0
    %s59 = sld [smem:[#allocation4 + %s58]]
    %s60 = smul.u32 2, %s59
    %s61 = sadd.s32 0, 0
    %s62 = smul.u32 %s61, 128
    %s63 = sadd.s32 %s62, 0
    %s64 = sld [smem:[#allocation4 + %s63]]
    %s65 = smul.u32 32, %s64
    %p67 = scmp.eq.s32.totalorder 0, 0
    // Predicated region
    $region18: #{tpu_custom_call.1} parent=1 // pred_check
      %p68 = pneg %p67
    $region19: #{tpu_custom_call.1} parent=1 // pred_check_branch
      %70 = sbr.rel (%p68) target = $region21
    $region20: #{tpu_custom_call.1} parent=1 // pred_region
      %71 = vst [vmem:[#allocation10] sm:$0xff] 0.0
    $region21: #{tpu_custom_call.1} parent=1 // pred_fallthru
      _
    %s72 = sld [smem:[#allocation3]]
    %p73 = scmp.lt.s32.totalorder 0, %s72
    // Predicated region
    $region22: #{tpu_custom_call.1} parent=1 // pred_check
      %p74 = pneg %p73
    $region23: #{tpu_custom_call.1} parent=1 // pred_check_branch
      %76 = sbr.rel (%p74) target = $region25
    $region24: #{tpu_custom_call.1} parent=1 // pred_region
      %v77 = vld [vmem:[#allocation10] sm:$0xff]
      %v78 = vld [vmem:[#allocation5] sm:$0xff]
      %v79 = vld [vmem:[#allocation8] sm:$0xf]
      %v80 = vld [vmem:[#allocation8 + $0x4] sm:$0xf]
      %v81 = vld [vmem:[#allocation8 + $0x8] sm:$0xf]
      %v82 = vld [vmem:[#allocation8 + $0xc] sm:$0xf]
      %v83 = vld [vmem:[#allocation8 + $0x10] sm:$0xf]
      %v84 = vld [vmem:[#allocation8 + $0x14] sm:$0xf]
      %v85 = vld [vmem:[#allocation8 + $0x18] sm:$0xf]
      %v86 = vld [vmem:[#allocation8 + $0x1c] sm:$0xf]
      %v87 = vld [vmem:[#allocation8 + $0x20] sm:$0xf]
      %v88 = vld [vmem:[#allocation8 + $0x24] sm:$0xf]
      %v89 = vld [vmem:[#allocation8 + $0x28] sm:$0xf]
      %v90 = vld [vmem:[#allocation8 + $0x2c] sm:$0xf]
      %v91 = vld [vmem:[#allocation8 + $0x30] sm:$0xf]
      %v92 = vld [vmem:[#allocation8 + $0x34] sm:$0xf]
      %v93 = vld [vmem:[#allocation8 + $0x38] sm:$0xf]
      %v94 = vld [vmem:[#allocation8 + $0x3c] sm:$0xf]
      %v95 = vld [vmem:[#allocation8 + $0x40] sm:$0xf]
      %v96 = vld [vmem:[#allocation8 + $0x44] sm:$0xf]
      %v97 = vld [vmem:[#allocation8 + $0x48] sm:$0xf]
      %v98 = vld [vmem:[#allocation8 + $0x4c] sm:$0xf]
      %v99 = vld [vmem:[#allocation8 + $0x50] sm:$0xf]
      %v100 = vld [vmem:[#allocation8 + $0x54] sm:$0xf]
      %v101 = vld [vmem:[#allocation8 + $0x58] sm:$0xf]
      %v102 = vld [vmem:[#allocation8 + $0x5c] sm:$0xf]
      %v103 = vld [vmem:[#allocation8 + $0x60] sm:$0xf]
      %v104 = vld [vmem:[#allocation8 + $0x64] sm:$0xf]
      %v105 = vld [vmem:[#allocation8 + $0x68] sm:$0xf]
      %v106 = vld [vmem:[#allocation8 + $0x6c] sm:$0xf]
      %v107 = vld [vmem:[#allocation8 + $0x70] sm:$0xf]
      %v108 = vld [vmem:[#allocation8 + $0x74] sm:$0xf]
      %v109 = vld [vmem:[#allocation8 + $0x78] sm:$0xf]
      %v110 = vld [vmem:[#allocation8 + $0x7c] sm:$0xf]
      %v112 = vunpack.c.l.b16 %v78
      %v113 = vunpack.c.h.b16 %v78
      %v114 = vpack.c.b16 %v112, %v112
      %v115 = vpack.c.b16 %v113, %v113
      %v150 = vunpack.c.l.b16 %v79
      %v151 = vunpack.c.l.b16 %v80
      %v152 = vunpack.c.l.b16 %v81
      %v153 = vunpack.c.l.b16 %v82
      %v154 = vunpack.c.l.b16 %v83
      %v155 = vunpack.c.l.b16 %v84
      %v156 = vunpack.c.l.b16 %v85
      %v157 = vunpack.c.l.b16 %v86
      %v158 = vunpack.c.l.b16 %v87
      %v159 = vunpack.c.l.b16 %v88
      %v160 = vunpack.c.l.b16 %v89
      %v161 = vunpack.c.l.b16 %v90
      %v162 = vunpack.c.l.b16 %v91
      %v163 = vunpack.c.l.b16 %v92
      %v164 = vunpack.c.l.b16 %v93
      %v165 = vunpack.c.l.b16 %v94
      %v166 = vunpack.c.l.b16 %v95
      %v167 = vunpack.c.l.b16 %v96
      %v168 = vunpack.c.l.b16 %v97
      %v169 = vunpack.c.l.b16 %v98
      %v170 = vunpack.c.l.b16 %v99
      %v171 = vunpack.c.l.b16 %v100
      %v172 = vunpack.c.l.b16 %v101
      %v173 = vunpack.c.l.b16 %v102
      %v174 = vunpack.c.l.b16 %v103
      %v175 = vunpack.c.l.b16 %v104
      %v176 = vunpack.c.l.b16 %v105
      %v177 = vunpack.c.l.b16 %v106
      %v178 = vunpack.c.l.b16 %v107
      %v179 = vunpack.c.l.b16 %v108
      %v180 = vunpack.c.l.b16 %v109
      %v181 = vunpack.c.l.b16 %v110
      %v182 = vpack.c.b16 %v151, %v150
      %v183 = vpack.c.b16 %v153, %v152
      %v184 = vpack.c.b16 %v155, %v154
      %v185 = vpack.c.b16 %v157, %v156
      %v186 = vpack.c.b16 %v159, %v158
      %v187 = vpack.c.b16 %v161, %v160
      %v188 = vpack.c.b16 %v163, %v162
      %v189 = vpack.c.b16 %v165, %v164
      %v190 = vpack.c.b16 %v167, %v166
      %v191 = vpack.c.b16 %v169, %v168
      %v192 = vpack.c.b16 %v171, %v170
      %v193 = vpack.c.b16 %v173, %v172
      %v194 = vpack.c.b16 %v175, %v174
      %v195 = vpack.c.b16 %v177, %v176
      %v196 = vpack.c.b16 %v179, %v178
      %v197 = vpack.c.b16 %v181, %v180
      %214 = vmatprep.subr.bf16.mxu0 0
      %215 = vmatpush1.bf16.msra.mxu0 %v182
      %216 = vmatprep.subr.bf16.mxu0 0
      %217 = vmatpush1.bf16.msra.mxu0 %v183
      %218 = vmatprep.subr.bf16.mxu0 0
      %219 = vmatpush1.bf16.msra.mxu0 %v184
      %220 = vmatprep.subr.bf16.mxu0 0
      %221 = vmatpush1.bf16.msra.mxu0 %v185
      %222 = vmatprep.subr.bf16.mxu0 0
      %223 = vmatpush1.bf16.msra.mxu0 %v186
      %224 = vmatprep.subr.bf16.mxu0 0
      %225 = vmatpush1.bf16.msra.mxu0 %v187
      %226 = vmatprep.subr.bf16.mxu0 0
      %227 = vmatpush1.bf16.msra.mxu0 %v188
      %228 = vmatprep.subr.bf16.mxu0 0
      %229 = vmatpush1.bf16.msra.mxu0 %v189
      %230 = vmatprep.subr.bf16.mxu0 0
      %231 = vmatpush1.bf16.msra.mxu0 %v190
      %232 = vmatprep.subr.bf16.mxu0 0
      %233 = vmatpush1.bf16.msra.mxu0 %v191
      %234 = vmatprep.subr.bf16.mxu0 0
      %235 = vmatpush1.bf16.msra.mxu0 %v192
      %236 = vmatprep.subr.bf16.mxu0 0
      %237 = vmatpush1.bf16.msra.mxu0 %v193
      %238 = vmatprep.subr.bf16.mxu0 0
      %239 = vmatpush1.bf16.msra.mxu0 %v194
      %240 = vmatprep.subr.bf16.mxu0 0
      %241 = vmatpush1.bf16.msra.mxu0 %v195
      %242 = vmatprep.subr.bf16.mxu0 0
      %243 = vmatpush1.bf16.msra.mxu0 %v196
      %244 = vmatprep.subr.bf16.mxu0 0
      %245 = vmatpush1.bf16.msra.mxu0 %v197
      %246 = vmatprep.mubr.bf16.mxu0 %v115
      %247 = vmatmul.mubr.bf16.gmra.mrb[0].mxu0 %v114
      %v248 = vpop.f32.mrb[0].mxu0
      %v249 = vadd.f32 0.0, %v248
      %v250 = vpop.f32.mrb[0].mxu0
      %v251 = vpop.f32.mrb[0].mxu0
      %v252 = vpop.f32.mrb[0].mxu0
      %253 = vdwg.mxu0
      %v254 = vadd.f32 %v77, %v249
      %255 = vst [vmem:[#allocation10] sm:$0xff] %v254
    $region25: #{tpu_custom_call.1} parent=1 // pred_fallthru
      _
    // Predicated region
    $region26: #{tpu_custom_call.1} parent=1 // pred_check
      _
    $region27: #{tpu_custom_call.1} parent=1 // pred_check_branch
      %257 = sbr.rel (0) target = $region29
    $region28: #{tpu_custom_call.1} parent=1 // pred_region
      %s259 = ssub.s32 128, 128
      %260 = vsyncadd [#allocation7], %s259
      %s262 = sshll.u32 [#allocation10], 4
      %s263 = int_to_ptr.vmem [resolvable:$true] %s262
      %265 = dma.vmem_to_hbm [thread:$0]  %s263, 128, %s4, [#allocation7]
    $region29: #{tpu_custom_call.1} parent=1 // pred_fallthru
      _
    // Predicated region
    $region30: #{tpu_custom_call.1} parent=1 // pred_check
      _
    $region31: #{tpu_custom_call.1} parent=1 // pred_check_branch
      %267 = sbr.rel (0) target = $region33
    $region32: #{tpu_custom_call.1} parent=1 // pred_region
      %268 = dma.done [#allocation7], 128
    $region33: #{tpu_custom_call.1} parent=1 // pred_fallthru
      _
    %269 = vsyncpa [#allocation6], 1
    %270 = vsyncpa [#allocation9], 1
    %271 = vsyncpa [#allocation7], 1

</llo_original>
